<compile_context>
chip_gen: v7x
topology: tpu7x:2x2x1
jax: 0.10.0
libtpu: 0.0.40
codegen_flags: <defaults>
</compile_context>

<pallas_src>
import functools

import jax
import jax.numpy as jnp
import numpy as np
from jax.experimental import pallas as pl
from jax.experimental.pallas import tpu as pltpu


def _round_up(x, m):
    return (x + m - 1) // m * m


def _qnet_kernel(back_bone_size, compute_dtype, act_dtype, *refs):
    """Full QNet forward for one batch tile.

    refs = (obs_ref, act_ref,
            w_obs, w_act, b_in,
            [w_bb_k, b_bb_k] * back_bone_size,
            w_out, b_out,
            o_ref)
    """
    obs_ref, act_ref = refs[0], refs[1]
    o_ref = refs[-1]
    w_obs_ref, w_act_ref, b_in_ref = refs[2], refs[3], refs[4]

    # First layer: concat([obs, act]) @ w_in == obs @ w_obs + act @ w_act.
    # The HBM concat is fused away algebraically.  (Merging the two dots via an
    # in-kernel concat / scratch slice-assign would save one MXU push chain,
    # but the kernel is HBM/overhead bound at hidden=32, so it is not worth the
    # sub-128-lane relayout risk.)
    h = jnp.dot(obs_ref[...].astype(compute_dtype), w_obs_ref[...],
                preferred_element_type=jnp.float32)
    h = h + jnp.dot(act_ref[...].astype(compute_dtype), w_act_ref[...],
                    preferred_element_type=jnp.float32)
    # Bias-add + ReLU on the f32 accumulator, then keep the activation in
    # act_dtype (bf16 by default) so the inter-layer tile is half the traffic.
    h = jnp.maximum(h + b_in_ref[...], 0.0).astype(act_dtype)

    for k in range(back_bone_size):
        w_ref = refs[5 + 2 * k]
        b_ref = refs[6 + 2 * k]
        h = jnp.dot(h.astype(compute_dtype), w_ref[...],
                    preferred_element_type=jnp.float32)
        h = jnp.maximum(h + b_ref[...], 0.0).astype(act_dtype)

    w_out_ref = refs[5 + 2 * back_bone_size]
    b_out_ref = refs[6 + 2 * back_bone_size]
    out = jnp.dot(h.astype(compute_dtype), w_out_ref[...],
                  preferred_element_type=jnp.float32)
    # Unpadded (tile_b, n_out) output block: with n_out=1 this is a masked vst,
    # but it cuts HBM writeback ~128x vs a 128-lane-padded f32 output, and HBM
    # DMA (not the vector-store slot) is the binding resource here.
    o_ref[...] = (out + b_out_ref[...]).astype(o_ref.dtype)


def qnet_forward_pallas(observation, action, params, *, tile_b=None,
                        compute_dtype=jnp.bfloat16, act_dtype=None):
    """QNet forward pass with the whole MLP fused in one Pallas kernel."""
    observation = observation.astype(jnp.float32)
    action = action.astype(jnp.float32)
    B, state_dim = observation.shape
    action_dim = action.shape[1]

    w_in, b_in = params["input"]
    backbone = params["backbone"]          # list of (w, b)
    w_out, b_out = params["output"]
    hidden = w_in.shape[1]
    n_out = w_out.shape[1]
    back_bone_size = len(backbone)

    cd = compute_dtype
    ad = compute_dtype if act_dtype is None else act_dtype

    # Batch tile: large (cap 4096 rows) to amortize the ~0.35 us per-grid-step
    # overhead.  Aim for an even number of tiles (>= 2) so both v7x TensorCores
    # get work under the "parallel" grid axis, and derive tile_b from
    # cdiv(B, num_tiles) so no wrapper-side padding of obs/act is ever needed
    # (the last block is simply ragged).
    if tile_b is None:
        cap = 4096
        target_tiles = max(2, 2 * pl.cdiv(pl.cdiv(B, cap), 2))
        tile_b = _round_up(pl.cdiv(B, target_tiles), 8)
    tile_b = max(8, _round_up(int(tile_b), 8))
    num_tiles = pl.cdiv(B, tile_b)

    # Split the input-layer weight instead of concatenating obs/action in HBM.
    w_obs = w_in[:state_dim]
    w_act = w_in[state_dim:]

    # bf16 matmul operands (f32 accumulation); biases stay f32 for the VPU.
    args = [observation, action,
            w_obs.astype(cd), w_act.astype(cd),
            b_in.reshape(1, hidden).astype(jnp.float32)]
    for (w, b) in backbone:
        args += [w.astype(cd), b.reshape(1, hidden).astype(jnp.float32)]
    args += [w_out.astype(cd), b_out.reshape(1, n_out).astype(jnp.float32)]

    def _tiled(shape):
        return pl.BlockSpec(shape, lambda i: (i, 0))

    def _full(shape):
        # Constant-index (fully resident) parameter blocks; tiny at hidden=32.
        return pl.BlockSpec(shape, lambda i: (0, 0))

    # All last block dims equal the full array dims, so the (8,128) rule is
    # satisfied even for narrow feature counts (12 / 4 / 32 / n_out).
    in_specs = [_tiled((tile_b, state_dim)), _tiled((tile_b, action_dim)),
                _full((state_dim, hidden)), _full((action_dim, hidden)),
                _full((1, hidden))]
    for _ in range(back_bone_size):
        in_specs += [_full((hidden, hidden)), _full((1, hidden))]
    in_specs += [_full((hidden, n_out)), _full((1, n_out))]

    out_spec = _tiled((tile_b, n_out))

    kernel = functools.partial(_qnet_kernel, back_bone_size, cd, ad)

    return pl.pallas_call(
        kernel,
        out_shape=jax.ShapeDtypeStruct((B, n_out), jnp.float32),
        grid=(num_tiles,),
        in_specs=in_specs,
        out_specs=out_spec,
        compiler_params=pltpu.CompilerParams(
            dimension_semantics=("parallel",)),
    )(*args)


def init_qnet_params(key, state_dim, action_dim, hidden_dim=32,
                     back_bone_size=2, number_outputs=1):
    """Deterministic init mimicking nn.Linear default (U(-1/sqrt(fan_in), ...))."""
    def linear(k, fan_in, fan_out):
        kw, kb = jax.random.split(k)
        bound = 1.0 / np.sqrt(fan_in)
        w = jax.random.uniform(kw, (fan_in, fan_out), jnp.float32, -bound, bound)
        b = jax.random.uniform(kb, (fan_out,), jnp.float32, -bound, bound)
        return w, b

    keys = jax.random.split(key, back_bone_size + 2)
    d_in = state_dim + action_dim
    params = {
        "input": linear(keys[0], d_in, hidden_dim),
        "backbone": [linear(keys[1 + k], hidden_dim, hidden_dim)
                     for k in range(back_bone_size)],
        "output": linear(keys[back_bone_size + 1], hidden_dim, number_outputs),
    }
    return params


def qnet_forward_ref(observation, action, params):
    """Pure-JAX reference (mirrors the PyTorch forward) in f32."""
    x = jnp.concatenate([observation, action], axis=-1).astype(jnp.float32)
    w, b = params["input"]
    x = jax.nn.relu(x @ w + b)
    for (w, b) in params["backbone"]:
        x = jax.nn.relu(x @ w + b)
    w, b = params["output"]
    return x @ w + b


if __name__ == "__main__":
    # Small shapes consistent with QNet(state_dim, action_dim, hidden_dim=...).
    # batch=50 is deliberately not a multiple of the tile: with the default
    # tiling it becomes 2 tiles of 32 rows (second one ragged), exercising the
    # no-pad ragged-block path and the >=2-tile (v7x megacore) path.
    batch = 50
    state_dim = 12
    action_dim = 4
    hidden_dim = 32
    back_bone_size = 2
    number_outputs = 1

    key = jax.random.PRNGKey(0)
    k_obs, k_act, k_params = jax.random.split(key, 3)
    observation = jax.random.normal(k_obs, (batch, state_dim), jnp.float32)
    action = jax.random.normal(k_act, (batch, action_dim), jnp.float32)
    params = init_qnet_params(k_params, state_dim, action_dim, hidden_dim,
                              back_bone_size, number_outputs)

    ref = jax.block_until_ready(qnet_forward_ref(observation, action, params))

    # f32 compute path.  Tolerance is 1e-4 (not 1e-5) because an f32 jnp.dot on
    # TPU may be lowered as multi-pass bf16 on the MXU depending on generation
    # / precision defaults.
    out_f32 = jax.block_until_ready(
        qnet_forward_pallas(observation, action, params,
                            compute_dtype=jnp.float32))
    assert out_f32.shape == (batch, number_outputs)
    np.testing.assert_allclose(np.asarray(out_f32), np.asarray(ref),
                               rtol=1e-4, atol=1e-4)

    # bf16 matmul operands + bf16 inter-layer activations (MXU-native fast
    # path), f32 accumulation.
    out_bf16 = jax.block_until_ready(
        qnet_forward_pallas(observation, action, params,
                            compute_dtype=jnp.bfloat16))
    assert out_bf16.shape == (batch, number_outputs)
    np.testing.assert_allclose(np.asarray(out_bf16), np.asarray(ref),
                               rtol=5e-2, atol=5e-2)

    print("KERNEL_OK")
</pallas_src>

<mosaic_0001>
module attributes {stable_mosaic.version = 11 : i64} {
  func.func @_qnet_kernel(%arg0: i32, %arg1: memref<32x12xf32, #tpu.memory_space<vmem>>, %arg2: memref<32x4xf32, #tpu.memory_space<vmem>>, %arg3: memref<12x32xf32, #tpu.memory_space<vmem>>, %arg4: memref<4x32xf32, #tpu.memory_space<vmem>>, %arg5: memref<1x32xf32, #tpu.memory_space<vmem>>, %arg6: memref<32x32xf32, #tpu.memory_space<vmem>>, %arg7: memref<1x32xf32, #tpu.memory_space<vmem>>, %arg8: memref<32x32xf32, #tpu.memory_space<vmem>>, %arg9: memref<1x32xf32, #tpu.memory_space<vmem>>, %arg10: memref<32x1xf32, #tpu.memory_space<vmem>>, %arg11: memref<1x1xf32, #tpu.memory_space<vmem>>, %arg12: memref<32x1xf32, #tpu.memory_space<vmem>>) attributes {dimension_semantics = [#tpu.dimension_semantics<parallel>], iteration_bounds = array<i64: 2>, scalar_prefetch = 0 : i64, scratch_operands = 0 : i64, tpu.core_type = #tpu.core_type<tc>, window_params = [{transform_indices = @transform_0, window_bounds = array<i64: 32, 12>}, {transform_indices = @transform_1, window_bounds = array<i64: 32, 4>}, {pipeline_mode = #tpu.pipeline_mode<synchronous>, transform_indices = @transform_2, window_bounds = array<i64: 12, 32>}, {pipeline_mode = #tpu.pipeline_mode<synchronous>, transform_indices = @transform_3, window_bounds = array<i64: 4, 32>}, {pipeline_mode = #tpu.pipeline_mode<synchronous>, transform_indices = @transform_4, window_bounds = array<i64: 1, 32>}, {pipeline_mode = #tpu.pipeline_mode<synchronous>, transform_indices = @transform_5, window_bounds = array<i64: 32, 32>}, {pipeline_mode = #tpu.pipeline_mode<synchronous>, transform_indices = @transform_6, window_bounds = array<i64: 1, 32>}, {pipeline_mode = #tpu.pipeline_mode<synchronous>, transform_indices = @transform_7, window_bounds = array<i64: 32, 32>}, {pipeline_mode = #tpu.pipeline_mode<synchronous>, transform_indices = @transform_8, window_bounds = array<i64: 1, 32>}, {pipeline_mode = #tpu.pipeline_mode<synchronous>, transform_indices = @transform_9, window_bounds = array<i64: 32, 1>}, {pipeline_mode = #tpu.pipeline_mode<synchronous>, transform_indices = @transform_10, window_bounds = array<i64: 1, 1>}, {transform_indices = @transform_11, window_bounds = array<i64: 32, 1>}]} {
    %c0 = arith.constant 0 : index
    %c0_0 = arith.constant 0 : index
    %0 = vector.load %arg1[%c0, %c0_0] : memref<32x12xf32, #tpu.memory_space<vmem>>, vector<32x12xf32>
    %c0_1 = arith.constant 0 : index
    %c0_2 = arith.constant 0 : index
    %1 = vector.load %arg3[%c0_1, %c0_2] : memref<12x32xf32, #tpu.memory_space<vmem>>, vector<12x32xf32>
    %cst = arith.constant dense<0.000000e+00> : vector<32x32xf32>
    %2 = tpu.matmul %0, %1, %cst {dimension_numbers = #tpu.dot_dimension_numbers<[1], [0], [0], [1], [0, 0, 1, 1], [], []>} : vector<32x12xf32>, vector<12x32xf32>, vector<32x32xf32> -> vector<32x32xf32>
    %c0_3 = arith.constant 0 : index
    %c0_4 = arith.constant 0 : index
    %3 = vector.load %arg2[%c0_3, %c0_4] : memref<32x4xf32, #tpu.memory_space<vmem>>, vector<32x4xf32>
    %c0_5 = arith.constant 0 : index
    %c0_6 = arith.constant 0 : index
    %4 = vector.load %arg4[%c0_5, %c0_6] : memref<4x32xf32, #tpu.memory_space<vmem>>, vector<4x32xf32>
    %cst_7 = arith.constant dense<0.000000e+00> : vector<32x32xf32>
    %5 = tpu.matmul %3, %4, %cst_7 {dimension_numbers = #tpu.dot_dimension_numbers<[1], [0], [0], [1], [0, 0, 1, 1], [], []>} : vector<32x4xf32>, vector<4x32xf32>, vector<32x32xf32> -> vector<32x32xf32>
    %6 = arith.addf %2, %5 : vector<32x32xf32>
    %c0_8 = arith.constant 0 : index
    %c0_9 = arith.constant 0 : index
    %7 = vector.load %arg5[%c0_8, %c0_9] : memref<1x32xf32, #tpu.memory_space<vmem>>, vector<1x32xf32>
    %8 = vector.broadcast %7 : vector<1x32xf32> to vector<32x32xf32>
    %9 = arith.addf %6, %8 : vector<32x32xf32>
    %cst_10 = arith.constant 0.000000e+00 : f32
    %10 = vector.broadcast %cst_10 : f32 to vector<32x32xf32>
    %11 = arith.maximumf %9, %10 : vector<32x32xf32>
    %c0_11 = arith.constant 0 : index
    %c0_12 = arith.constant 0 : index
    %12 = vector.load %arg6[%c0_11, %c0_12] : memref<32x32xf32, #tpu.memory_space<vmem>>, vector<32x32xf32>
    %cst_13 = arith.constant dense<0.000000e+00> : vector<32x32xf32>
    %13 = tpu.matmul %11, %12, %cst_13 {dimension_numbers = #tpu.dot_dimension_numbers<[1], [0], [0], [1], [0, 0, 1, 1], [], []>} : vector<32x32xf32>, vector<32x32xf32>, vector<32x32xf32> -> vector<32x32xf32>
    %c0_14 = arith.constant 0 : index
    %c0_15 = arith.constant 0 : index
    %14 = vector.load %arg7[%c0_14, %c0_15] : memref<1x32xf32, #tpu.memory_space<vmem>>, vector<1x32xf32>
    %15 = vector.broadcast %14 : vector<1x32xf32> to vector<32x32xf32>
    %16 = arith.addf %13, %15 : vector<32x32xf32>
    %cst_16 = arith.constant 0.000000e+00 : f32
    %17 = vector.broadcast %cst_16 : f32 to vector<32x32xf32>
    %18 = arith.maximumf %16, %17 : vector<32x32xf32>
    %c0_17 = arith.constant 0 : index
    %c0_18 = arith.constant 0 : index
    %19 = vector.load %arg8[%c0_17, %c0_18] : memref<32x32xf32, #tpu.memory_space<vmem>>, vector<32x32xf32>
    %cst_19 = arith.constant dense<0.000000e+00> : vector<32x32xf32>
    %20 = tpu.matmul %18, %19, %cst_19 {dimension_numbers = #tpu.dot_dimension_numbers<[1], [0], [0], [1], [0, 0, 1, 1], [], []>} : vector<32x32xf32>, vector<32x32xf32>, vector<32x32xf32> -> vector<32x32xf32>
    %c0_20 = arith.constant 0 : index
    %c0_21 = arith.constant 0 : index
    %21 = vector.load %arg9[%c0_20, %c0_21] : memref<1x32xf32, #tpu.memory_space<vmem>>, vector<1x32xf32>
    %22 = vector.broadcast %21 : vector<1x32xf32> to vector<32x32xf32>
    %23 = arith.addf %20, %22 : vector<32x32xf32>
    %cst_22 = arith.constant 0.000000e+00 : f32
    %24 = vector.broadcast %cst_22 : f32 to vector<32x32xf32>
    %25 = arith.maximumf %23, %24 : vector<32x32xf32>
    %c0_23 = arith.constant 0 : index
    %c0_24 = arith.constant 0 : index
    %26 = vector.load %arg10[%c0_23, %c0_24] : memref<32x1xf32, #tpu.memory_space<vmem>>, vector<32x1xf32>
    %cst_25 = arith.constant dense<0.000000e+00> : vector<32x1xf32>
    %27 = tpu.matmul %25, %26, %cst_25 {dimension_numbers = #tpu.dot_dimension_numbers<[1], [0], [0], [1], [0, 0, 1, 1], [], []>} : vector<32x32xf32>, vector<32x1xf32>, vector<32x1xf32> -> vector<32x1xf32>
    %c0_26 = arith.constant 0 : index
    %c0_27 = arith.constant 0 : index
    %28 = vector.load %arg11[%c0_26, %c0_27] : memref<1x1xf32, #tpu.memory_space<vmem>>, vector<1x1xf32>
    %29 = vector.broadcast %28 : vector<1x1xf32> to vector<32x1xf32>
    %30 = arith.addf %27, %29 : vector<32x1xf32>
    %c0_28 = arith.constant 0 : index
    %c0_29 = arith.constant 0 : index
    %31 = vector.load %arg12[%c0_28, %c0_29] : memref<32x1xf32, #tpu.memory_space<vmem>>, vector<32x1xf32>
    tpu.vector_store %arg12[%c0_28, %c0_29], %30 {strides = array<i32>} : memref<32x1xf32, #tpu.memory_space<vmem>>, vector<32x1xf32>,
    return
  }
  func.func @transform_0(%arg0: i32) -> (i32, i32) {
    %c0_i32 = arith.constant 0 : i32
    %c0_i32_0 = arith.constant 0 : i32
    return %arg0, %c0_i32 : i32, i32
  }
  func.func @transform_1(%arg0: i32) -> (i32, i32) {
    %c0_i32 = arith.constant 0 : i32
    %c0_i32_0 = arith.constant 0 : i32
    return %arg0, %c0_i32 : i32, i32
  }
  func.func @transform_2(%arg0: i32) -> (i32, i32) {
    %c0_i32 = arith.constant 0 : i32
    %c0_i32_0 = arith.constant 0 : i32
    %c0_i32_1 = arith.constant 0 : i32
    return %c0_i32, %c0_i32_0 : i32, i32
  }
  func.func @transform_3(%arg0: i32) -> (i32, i32) {
    %c0_i32 = arith.constant 0 : i32
    %c0_i32_0 = arith.constant 0 : i32
    %c0_i32_1 = arith.constant 0 : i32
    return %c0_i32, %c0_i32_0 : i32, i32
  }
  func.func @transform_4(%arg0: i32) -> (i32, i32) {
    %c0_i32 = arith.constant 0 : i32
    %c0_i32_0 = arith.constant 0 : i32
    %c0_i32_1 = arith.constant 0 : i32
    return %c0_i32, %c0_i32_0 : i32, i32
  }
  func.func @transform_5(%arg0: i32) -> (i32, i32) {
    %c0_i32 = arith.constant 0 : i32
    %c0_i32_0 = arith.constant 0 : i32
    %c0_i32_1 = arith.constant 0 : i32
    return %c0_i32, %c0_i32_0 : i32, i32
  }
  func.func @transform_6(%arg0: i32) -> (i32, i32) {
    %c0_i32 = arith.constant 0 : i32
    %c0_i32_0 = arith.constant 0 : i32
    %c0_i32_1 = arith.constant 0 : i32
    return %c0_i32, %c0_i32_0 : i32, i32
  }
  func.func @transform_7(%arg0: i32) -> (i32, i32) {
    %c0_i32 = arith.constant 0 : i32
    %c0_i32_0 = arith.constant 0 : i32
    %c0_i32_1 = arith.constant 0 : i32
    return %c0_i32, %c0_i32_0 : i32, i32
  }
  func.func @transform_8(%arg0: i32) -> (i32, i32) {
    %c0_i32 = arith.constant 0 : i32
    %c0_i32_0 = arith.constant 0 : i32
    %c0_i32_1 = arith.constant 0 : i32
    return %c0_i32, %c0_i32_0 : i32, i32
  }
  func.func @transform_9(%arg0: i32) -> (i32, i32) {
    %c0_i32 = arith.constant 0 : i32
    %c0_i32_0 = arith.constant 0 : i32
    %c0_i32_1 = arith.constant 0 : i32
    return %c0_i32, %c0_i32_0 : i32, i32
  }
  func.func @transform_10(%arg0: i32) -> (i32, i32) {
    %c0_i32 = arith.constant 0 : i32
    %c0_i32_0 = arith.constant 0 : i32
    %c0_i32_1 = arith.constant 0 : i32
    return %c0_i32, %c0_i32_0 : i32, i32
  }
  func.func @transform_11(%arg0: i32) -> (i32, i32) {
    %c0_i32 = arith.constant 0 : i32
    %c0_i32_0 = arith.constant 0 : i32
    return %arg0, %c0_i32 : i32, i32
  }
}

</mosaic_0001>

<llo_original>
// kernel: tpu_custom_call.1
$region0: #{tpu_custom_call.1}
  #allocation0 [shape = 'u32[]', space=smem, size = 0x4, offset = 0x4, fixed_abs, tag = 'smem constant byte address 0x4 - core index']
  #allocation1 [shape = 'u32[144,128]{1,0:T(1,128)}', space=vmem, size = 0x12000, scoped, tag = 'internal scratch']
  #allocation2 [shape = 'f32[1,1]{1,0:T(1,128)S(1)}', space=vmem, size = 0x200, scoped, tag = 'scoped memory for tpu_custom_call.1']
  %s0 = inlined_call_operand.vmem [shape: f32[50,12], index: 0, kind: input, shape index: {}]
  %s1 = inlined_call_operand.vmem [shape: f32[50,4], index: 1, kind: input, shape index: {}]
  %s2 = inlined_call_operand.vmem [shape: f32[12,32], index: 2, kind: input, shape index: {}]
  %s3 = inlined_call_operand.vmem [shape: f32[4,32], index: 3, kind: input, shape index: {}]
  %s4 = inlined_call_operand.vmem [shape: f32[1,32], index: 4, kind: input, shape index: {}]
  %s5 = inlined_call_operand.vmem [shape: f32[32,32], index: 5, kind: input, shape index: {}]
  %s6 = inlined_call_operand.vmem [shape: f32[1,32], index: 6, kind: input, shape index: {}]
  %s7 = inlined_call_operand.vmem [shape: f32[32,32], index: 7, kind: input, shape index: {}]
  %s8 = inlined_call_operand.vmem [shape: f32[1,32], index: 8, kind: input, shape index: {}]
  %s9 = inlined_call_operand.vmem [shape: f32[32,1], index: 9, kind: input, shape index: {}]
  %s10 = inlined_call_operand.<no memory space> [shape: f32[1,1], index: 10, kind: input, shape index: {}]
  %s11 = inlined_call_operand.vmem [shape: f32[50,1], index: 11, kind: output, shape index: {}]
  %s12 = sld [smem:[#allocation0]]
  $region125: #{tpu_custom_call.1} parent=0
    _
  %s14 = ssub.s32 1, %s12
  %s15 = scalar_select 0, %s14, %s12
  %v16 = vstv %s10
  %17 = vst [vmem:[#allocation2] sm:$0x1] %v16
  $region1: #{tpu_custom_call.1} parent=0
    #allocation3 [shape = 'u8[32768]{0}', space=vmem, size = 0x8000, scoped, tag = 'output window, operand 0']
    loop: start=0, step=1, limit=4
    $region2: #{tpu_custom_call.1} parent=1 // loop_pre_header
      _
    $region3: #{tpu_custom_call.1} parent=1 // loop_header
      %s19 = sphi 0, %s23
      %p20 = scmp.ge.s32.totalorder %s19, 4
      %s29 = sphi 0, %s31
      %s32 = sphi 0, %s29
      %s33 = sphi 0, %s32
      %s49 = sphi 0, %s33
      %s55 = sphi 0, %s57
      %s58 = sphi 0, %s55
      %s59 = sphi 0, %s58
      %s75 = sphi 0, %s59
      %s79 = sphi 0, %s79
      %s81 = sphi 0, %s79
      %s82 = sphi 0, %s81
      %s96 = sphi 0, %s82
      %s100 = sphi 0, %s100
      %s102 = sphi 0, %s100
      %s103 = sphi 0, %s102
      %s117 = sphi 0, %s103
      %s121 = sphi 0, %s121
      %s123 = sphi 0, %s121
      %s124 = sphi 0, %s123
      %s138 = sphi 0, %s124
      %s142 = sphi 0, %s142
      %s144 = sphi 0, %s142
      %s145 = sphi 0, %s144
      %s159 = sphi 0, %s145
      %s163 = sphi 0, %s163
      %s165 = sphi 0, %s163
      %s166 = sphi 0, %s165
      %s180 = sphi 0, %s166
      %s184 = sphi 0, %s184
      %s186 = sphi 0, %s184
      %s187 = sphi 0, %s186
      %s201 = sphi 0, %s187
      %s205 = sphi 0, %s205
      %s207 = sphi 0, %s205
      %s208 = sphi 0, %s207
      %s222 = sphi 0, %s208
      %s226 = sphi 0, %s226
      %s228 = sphi 0, %s226
      %s229 = sphi 0, %s228
      %s243 = sphi 0, %s229
      %s247 = sphi 0, %s247
      %s249 = sphi 0, %s247
      %s250 = sphi 0, %s249
      %s264 = sphi 0, %s250
      %s270 = sphi 0, %s272
      %s273 = sphi 0, %s270
      %s274 = sphi 0, %s273
      %s290 = sphi 0, %s274
    $region4: #{tpu_custom_call.1} parent=1 // loop_header_branch
      %22 = sbr.rel (%p20) target = $region8
    $region5: #{tpu_custom_call.1} parent=1 // loop_body
      %s24 = ssub.s32 %s19, 1
      %s25 = ssub.s32 %s19, 2
      %s26 = sadd.s32 %s19, 1
      %s27 = ssub.s32 %s19, %s26
      %p28 = scmp.eq.s32.totalorder %s27, 0
      %s30 = sadd.s32 %s29, 1
      %s31 = scalar_select %p28, %s29, %s30
      %p34 = pneg %p28
      %p35 = scmp.eq.s32.totalorder %s19, 1
      %p36 = por %p34, %p35
      %p37 = scmp.ne.s32.totalorder %s29, %s32
      %p38 = scmp.eq.s32.totalorder %s19, 0
      %p39 = por %p37, %p38
      %p40 = scmp.ne.s32.totalorder %s29, %s32
      %p41 = scmp.eq.s32.totalorder %s24, 1
      %p42 = por %p40, %p41
      %p43 = scmp.ne.s32.totalorder %s32, %s33
      %p44 = scmp.eq.s32.totalorder %s24, 0
      %p45 = por %p43, %p44
      %p46 = scmp.ne.s32.totalorder %s32, %s33
      %p47 = scmp.eq.s32.totalorder %s25, 1
      %p48 = por %p46, %p47
      %p50 = scmp.ne.s32.totalorder %s33, %s49
      %p51 = scmp.eq.s32.totalorder %s25, 0
      %p52 = por %p50, %p51
      %s53 = ssub.s32 %s19, %s26
      %p54 = scmp.eq.s32.totalorder %s53, 0
      %s56 = sadd.s32 %s55, 1
      %s57 = scalar_select %p54, %s55, %s56
      %p60 = pneg %p54
      %p61 = scmp.eq.s32.totalorder %s19, 1
      %p62 = por %p60, %p61
      %p63 = scmp.ne.s32.totalorder %s55, %s58
      %p64 = scmp.eq.s32.totalorder %s19, 0
      %p65 = por %p63, %p64
      %p66 = scmp.ne.s32.totalorder %s55, %s58
      %p67 = scmp.eq.s32.totalorder %s24, 1
      %p68 = por %p66, %p67
      %p69 = scmp.ne.s32.totalorder %s58, %s59
      %p70 = scmp.eq.s32.totalorder %s24, 0
      %p71 = por %p69, %p70
      %p72 = scmp.ne.s32.totalorder %s58, %s59
      %p73 = scmp.eq.s32.totalorder %s25, 1
      %p74 = por %p72, %p73
      %p76 = scmp.ne.s32.totalorder %s59, %s75
      %p77 = scmp.eq.s32.totalorder %s25, 0
      %p78 = por %p76, %p77
      %s80 = sadd.s32 %s79, 1
      %p83 = scmp.eq.s32.totalorder %s19, 1
      %p84 = scmp.ne.s32.totalorder %s79, %s81
      %p85 = scmp.eq.s32.totalorder %s19, 0
      %p86 = por %p84, %p85
      %p87 = scmp.ne.s32.totalorder %s79, %s81
      %p88 = scmp.eq.s32.totalorder %s24, 1
      %p89 = por %p87, %p88
      %p90 = scmp.ne.s32.totalorder %s81, %s82
      %p91 = scmp.eq.s32.totalorder %s24, 0
      %p92 = por %p90, %p91
      %p93 = scmp.ne.s32.totalorder %s81, %s82
      %p94 = scmp.eq.s32.totalorder %s25, 1
      %p95 = por %p93, %p94
      %p97 = scmp.ne.s32.totalorder %s82, %s96
      %p98 = scmp.eq.s32.totalorder %s25, 0
      %p99 = por %p97, %p98
      %s101 = sadd.s32 %s100, 1
      %p104 = scmp.eq.s32.totalorder %s19, 1
      %p105 = scmp.ne.s32.totalorder %s100, %s102
      %p106 = scmp.eq.s32.totalorder %s19, 0
      %p107 = por %p105, %p106
      %p108 = scmp.ne.s32.totalorder %s100, %s102
      %p109 = scmp.eq.s32.totalorder %s24, 1
      %p110 = por %p108, %p109
      %p111 = scmp.ne.s32.totalorder %s102, %s103
      %p112 = scmp.eq.s32.totalorder %s24, 0
      %p113 = por %p111, %p112
      %p114 = scmp.ne.s32.totalorder %s102, %s103
      %p115 = scmp.eq.s32.totalorder %s25, 1
      %p116 = por %p114, %p115
      %p118 = scmp.ne.s32.totalorder %s103, %s117
      %p119 = scmp.eq.s32.totalorder %s25, 0
      %p120 = por %p118, %p119
      %s122 = sadd.s32 %s121, 1
      %p125 = scmp.eq.s32.totalorder %s19, 1
      %p126 = scmp.ne.s32.totalorder %s121, %s123
      %p127 = scmp.eq.s32.totalorder %s19, 0
      %p128 = por %p126, %p127
      %p129 = scmp.ne.s32.totalorder %s121, %s123
      %p130 = scmp.eq.s32.totalorder %s24, 1
      %p131 = por %p129, %p130
      %p132 = scmp.ne.s32.totalorder %s123, %s124
      %p133 = scmp.eq.s32.totalorder %s24, 0
      %p134 = por %p132, %p133
      %p135 = scmp.ne.s32.totalorder %s123, %s124
      %p136 = scmp.eq.s32.totalorder %s25, 1
      %p137 = por %p135, %p136
      %p139 = scmp.ne.s32.totalorder %s124, %s138
      %p140 = scmp.eq.s32.totalorder %s25, 0
      %p141 = por %p139, %p140
      %s143 = sadd.s32 %s142, 1
      %p146 = scmp.eq.s32.totalorder %s19, 1
      %p147 = scmp.ne.s32.totalorder %s142, %s144
      %p148 = scmp.eq.s32.totalorder %s19, 0
      %p149 = por %p147, %p148
      %p150 = scmp.ne.s32.totalorder %s142, %s144
      %p151 = scmp.eq.s32.totalorder %s24, 1
      %p152 = por %p150, %p151
      %p153 = scmp.ne.s32.totalorder %s144, %s145
      %p154 = scmp.eq.s32.totalorder %s24, 0
      %p155 = por %p153, %p154
      %p156 = scmp.ne.s32.totalorder %s144, %s145
      %p157 = scmp.eq.s32.totalorder %s25, 1
      %p158 = por %p156, %p157
      %p160 = scmp.ne.s32.totalorder %s145, %s159
      %p161 = scmp.eq.s32.totalorder %s25, 0
      %p162 = por %p160, %p161
      %s164 = sadd.s32 %s163, 1
      %p167 = scmp.eq.s32.totalorder %s19, 1
      %p168 = scmp.ne.s32.totalorder %s163, %s165
      %p169 = scmp.eq.s32.totalorder %s19, 0
      %p170 = por %p168, %p169
      %p171 = scmp.ne.s32.totalorder %s163, %s165
      %p172 = scmp.eq.s32.totalorder %s24, 1
      %p173 = por %p171, %p172
      %p174 = scmp.ne.s32.totalorder %s165, %s166
      %p175 = scmp.eq.s32.totalorder %s24, 0
      %p176 = por %p174, %p175
      %p177 = scmp.ne.s32.totalorder %s165, %s166
      %p178 = scmp.eq.s32.totalorder %s25, 1
      %p179 = por %p177, %p178
      %p181 = scmp.ne.s32.totalorder %s166, %s180
      %p182 = scmp.eq.s32.totalorder %s25, 0
      %p183 = por %p181, %p182
      %s185 = sadd.s32 %s184, 1
      %p188 = scmp.eq.s32.totalorder %s19, 1
      %p189 = scmp.ne.s32.totalorder %s184, %s186
      %p190 = scmp.eq.s32.totalorder %s19, 0
      %p191 = por %p189, %p190
      %p192 = scmp.ne.s32.totalorder %s184, %s186
      %p193 = scmp.eq.s32.totalorder %s24, 1
      %p194 = por %p192, %p193
      %p195 = scmp.ne.s32.totalorder %s186, %s187
      %p196 = scmp.eq.s32.totalorder %s24, 0
      %p197 = por %p195, %p196
      %p198 = scmp.ne.s32.totalorder %s186, %s187
      %p199 = scmp.eq.s32.totalorder %s25, 1
      %p200 = por %p198, %p199
      %p202 = scmp.ne.s32.totalorder %s187, %s201
      %p203 = scmp.eq.s32.totalorder %s25, 0
      %p204 = por %p202, %p203
      %s206 = sadd.s32 %s205, 1
      %p209 = scmp.eq.s32.totalorder %s19, 1
      %p210 = scmp.ne.s32.totalorder %s205, %s207
      %p211 = scmp.eq.s32.totalorder %s19, 0
      %p212 = por %p210, %p211
      %p213 = scmp.ne.s32.totalorder %s205, %s207
      %p214 = scmp.eq.s32.totalorder %s24, 1
      %p215 = por %p213, %p214
      %p216 = scmp.ne.s32.totalorder %s207, %s208
      %p217 = scmp.eq.s32.totalorder %s24, 0
      %p218 = por %p216, %p217
      %p219 = scmp.ne.s32.totalorder %s207, %s208
      %p220 = scmp.eq.s32.totalorder %s25, 1
      %p221 = por %p219, %p220
      %p223 = scmp.ne.s32.totalorder %s208, %s222
      %p224 = scmp.eq.s32.totalorder %s25, 0
      %p225 = por %p223, %p224
      %s227 = sadd.s32 %s226, 1
      %p230 = scmp.eq.s32.totalorder %s19, 1
      %p231 = scmp.ne.s32.totalorder %s226, %s228
      %p232 = scmp.eq.s32.totalorder %s19, 0
      %p233 = por %p231, %p232
      %p234 = scmp.ne.s32.totalorder %s226, %s228
      %p235 = scmp.eq.s32.totalorder %s24, 1
      %p236 = por %p234, %p235
      %p237 = scmp.ne.s32.totalorder %s228, %s229
      %p238 = scmp.eq.s32.totalorder %s24, 0
      %p239 = por %p237, %p238
      %p240 = scmp.ne.s32.totalorder %s228, %s229
      %p241 = scmp.eq.s32.totalorder %s25, 1
      %p242 = por %p240, %p241
      %p244 = scmp.ne.s32.totalorder %s229, %s243
      %p245 = scmp.eq.s32.totalorder %s25, 0
      %p246 = por %p244, %p245
      %s248 = sadd.s32 %s247, 1
      %p251 = scmp.eq.s32.totalorder %s19, 1
      %p252 = scmp.ne.s32.totalorder %s247, %s249
      %p253 = scmp.eq.s32.totalorder %s19, 0
      %p254 = por %p252, %p253
      %p255 = scmp.ne.s32.totalorder %s247, %s249
      %p256 = scmp.eq.s32.totalorder %s24, 1
      %p257 = por %p255, %p256
      %p258 = scmp.ne.s32.totalorder %s249, %s250
      %p259 = scmp.eq.s32.totalorder %s24, 0
      %p260 = por %p258, %p259
      %p261 = scmp.ne.s32.totalorder %s249, %s250
      %p262 = scmp.eq.s32.totalorder %s25, 1
      %p263 = por %p261, %p262
      %p265 = scmp.ne.s32.totalorder %s250, %s264
      %p266 = scmp.eq.s32.totalorder %s25, 0
      %p267 = por %p265, %p266
      %s268 = ssub.s32 %s19, %s26
      %p269 = scmp.eq.s32.totalorder %s268, 0
      %s271 = sadd.s32 %s270, 1
      %s272 = scalar_select %p269, %s270, %s271
      %p275 = pneg %p269
      %p276 = scmp.eq.s32.totalorder %s19, 1
      %p277 = por %p275, %p276
      %p278 = scmp.ne.s32.totalorder %s270, %s273
      %p279 = scmp.eq.s32.totalorder %s19, 0
      %p280 = por %p278, %p279
      %p281 = scmp.ne.s32.totalorder %s270, %s273
      %p282 = scmp.eq.s32.totalorder %s24, 1
      %p283 = por %p281, %p282
      %p284 = scmp.ne.s32.totalorder %s273, %s274
      %p285 = scmp.eq.s32.totalorder %s24, 0
      %p286 = por %p284, %p285
      %p287 = scmp.ne.s32.totalorder %s273, %s274
      %p288 = scmp.eq.s32.totalorder %s25, 1
      %p289 = por %p287, %p288
      %p291 = scmp.ne.s32.totalorder %s274, %s290
      %p292 = scmp.eq.s32.totalorder %s25, 0
      %p293 = por %p291, %p292
      %p294 = scmp.le.s32.totalorder 1, %s19
      %p295 = scmp.lt.s32.totalorder %s19, 3
      %p296 = pnand %p294, %p295
      %p297 = pneg %p296
      // Predicated region
      $region9: #{tpu_custom_call.1} parent=5 // pred_check
        _
      $region10: #{tpu_custom_call.1} parent=5 // pred_check_branch
        %299 = sbr.rel (%p296) target = $region12
      $region11: #{tpu_custom_call.1} parent=5 // pred_region
        %s300 = ssub.s32 %s19, 1
        // Predicated region
        $region13: #{tpu_custom_call.1} parent=11 // pred_check
          %p301 = pneg %p92
        $region14: #{tpu_custom_call.1} parent=11 // pred_check_branch
          %303 = sbr.rel (%p301) target = $region16
        $region15: #{tpu_custom_call.1} parent=11 // pred_region
          _
        $region16: #{tpu_custom_call.1} parent=11 // pred_fallthru
          _
        // Predicated region
        $region17: #{tpu_custom_call.1} parent=11 // pred_check
          %p304 = pneg %p113
        $region18: #{tpu_custom_call.1} parent=11 // pred_check_branch
          %306 = sbr.rel (%p304) target = $region20
        $region19: #{tpu_custom_call.1} parent=11 // pred_region
          _
        $region20: #{tpu_custom_call.1} parent=11 // pred_fallthru
          _
        // Predicated region
        $region21: #{tpu_custom_call.1} parent=11 // pred_check
          %p307 = pneg %p134
        $region22: #{tpu_custom_call.1} parent=11 // pred_check_branch
          %309 = sbr.rel (%p307) target = $region24
        $region23: #{tpu_custom_call.1} parent=11 // pred_region
          _
        $region24: #{tpu_custom_call.1} parent=11 // pred_fallthru
          _
        // Predicated region
        $region25: #{tpu_custom_call.1} parent=11 // pred_check
          %p310 = pneg %p155
        $region26: #{tpu_custom_call.1} parent=11 // pred_check_branch
          %312 = sbr.rel (%p310) target = $region28
        $region27: #{tpu_custom_call.1} parent=11 // pred_region
          _
        $region28: #{tpu_custom_call.1} parent=11 // pred_fallthru
          _
        // Predicated region
        $region29: #{tpu_custom_call.1} parent=11 // pred_check
          %p313 = pneg %p176
        $region30: #{tpu_custom_call.1} parent=11 // pred_check_branch
          %315 = sbr.rel (%p313) target = $region32
        $region31: #{tpu_custom_call.1} parent=11 // pred_region
          _
        $region32: #{tpu_custom_call.1} parent=11 // pred_fallthru
          _
        // Predicated region
        $region33: #{tpu_custom_call.1} parent=11 // pred_check
          %p316 = pneg %p197
        $region34: #{tpu_custom_call.1} parent=11 // pred_check_branch
          %318 = sbr.rel (%p316) target = $region36
        $region35: #{tpu_custom_call.1} parent=11 // pred_region
          _
        $region36: #{tpu_custom_call.1} parent=11 // pred_fallthru
          _
        // Predicated region
        $region37: #{tpu_custom_call.1} parent=11 // pred_check
          %p319 = pneg %p218
        $region38: #{tpu_custom_call.1} parent=11 // pred_check_branch
          %321 = sbr.rel (%p319) target = $region40
        $region39: #{tpu_custom_call.1} parent=11 // pred_region
          _
        $region40: #{tpu_custom_call.1} parent=11 // pred_fallthru
          _
        // Predicated region
        $region41: #{tpu_custom_call.1} parent=11 // pred_check
          %p322 = pneg %p239
        $region42: #{tpu_custom_call.1} parent=11 // pred_check_branch
          %324 = sbr.rel (%p322) target = $region44
        $region43: #{tpu_custom_call.1} parent=11 // pred_region
          _
        $region44: #{tpu_custom_call.1} parent=11 // pred_fallthru
          _
        // Predicated region
        $region45: #{tpu_custom_call.1} parent=11 // pred_check
          %p325 = pneg %p260
        $region46: #{tpu_custom_call.1} parent=11 // pred_check_branch
          %327 = sbr.rel (%p325) target = $region48
        $region47: #{tpu_custom_call.1} parent=11 // pred_region
          _
        $region48: #{tpu_custom_call.1} parent=11 // pred_fallthru
          _
      $region12: #{tpu_custom_call.1} parent=5 // pred_fallthru
        _
      %p328 = scmp.lt.s32.totalorder %s19, 2
      // Predicated region
      $region49: #{tpu_custom_call.1} parent=5 // pred_check
        %p329 = pneg %p328
      $region50: #{tpu_custom_call.1} parent=5 // pred_check_branch
        %331 = sbr.rel (%p329) target = $region52
      $region51: #{tpu_custom_call.1} parent=5 // pred_region
        // Predicated region
        $region53: #{tpu_custom_call.1} parent=51 // pred_check
          %p332 = pneg %p39
        $region54: #{tpu_custom_call.1} parent=51 // pred_check_branch
          %334 = sbr.rel (%p332) target = $region56
        $region55: #{tpu_custom_call.1} parent=51 // pred_region
          %s335 = smul.u32 4, %s19
          %s336 = ssub.s32 7, %s335
          %p337 = scmp.lt.s32.totalorder %s336, 4
          %s338 = scalar_select %p337, %s336, 4
          %s339 = smul.u32 128, %s338
          %p340 = scmp.lt.s32.totalorder %s335, 6
          %s341 = scalar_select %p340, %s335, 6
          %s342 = smul.addr %s341, 8
          %s343 = scalar_lea.vmem %s0, %s342
          %s344 = smul.u32 4, %s19
          %s345 = ssub.s32 7, %s344
          %p346 = scmp.lt.s32.totalorder %s345, 4
          %s347 = scalar_select %p346, %s345, 4
          %s348 = smul.u32 128, %s347
        $region56: #{tpu_custom_call.1} parent=51 // pred_fallthru
          _
        // Predicated region
        $region57: #{tpu_custom_call.1} parent=51 // pred_check
          %p349 = pneg %p65
        $region58: #{tpu_custom_call.1} parent=51 // pred_check_branch
          %351 = sbr.rel (%p349) target = $region60
        $region59: #{tpu_custom_call.1} parent=51 // pred_region
          %s352 = smul.u32 4, %s19
          %s353 = ssub.s32 7, %s352
          %p354 = scmp.lt.s32.totalorder %s353, 4
          %s355 = scalar_select %p354, %s353, 4
          %s356 = smul.u32 128, %s355
          %p357 = scmp.lt.s32.totalorder %s352, 6
          %s358 = scalar_select %p357, %s352, 6
          %s359 = smul.addr %s358, 8
          %s360 = scalar_lea.vmem %s1, %s359
          %s361 = smul.u32 4, %s19
          %s362 = ssub.s32 7, %s361
          %p363 = scmp.lt.s32.totalorder %s362, 4
          %s364 = scalar_select %p363, %s362, 4
          %s365 = smul.u32 128, %s364
        $region60: #{tpu_custom_call.1} parent=51 // pred_fallthru
          _
      $region52: #{tpu_custom_call.1} parent=5 // pred_fallthru
        _
      %p366 = scmp.le.s32.totalorder 1, %s19
      %p367 = scmp.lt.s32.totalorder %s19, 3
      %p368 = pnand %p366, %p367
      %p369 = pneg %p368
      // Predicated region
      $region61: #{tpu_custom_call.1} parent=5 // pred_check
        _
      $region62: #{tpu_custom_call.1} parent=5 // pred_check_branch
        %371 = sbr.rel (%p368) target = $region64
      $region63: #{tpu_custom_call.1} parent=5 // pred_region
        %s372 = ssub.s32 %s19, 1
        %s373 = smul.u32 4, %s24
        %s374 = ssub.s32 7, %s373
        %p375 = scmp.lt.s32.totalorder %s374, 4
        %s376 = scalar_select %p375, %s374, 4
        %s377 = smul.u32 128, %s376
        %p378 = scmp.lt.s32.totalorder %s373, 6
        %s379 = scalar_select %p378, %s373, 6
        %s380 = smul.addr %s379, 8
        %s381 = scalar_lea.vmem %s0, %s380
        %p382 = pneg %p45
        %p383 = pneg %p42
        %s384 = smul.u32 4, %s24
        %s385 = ssub.s32 7, %s384
        %p386 = scmp.lt.s32.totalorder %s385, 4
        %s387 = scalar_select %p386, %s385, 4
        %s388 = smul.u32 128, %s387
        %p389 = scmp.lt.s32.totalorder %s384, 6
        %s390 = scalar_select %p389, %s384, 6
        %s391 = smul.addr %s390, 8
        %s392 = scalar_lea.vmem %s1, %s391
        %p393 = pneg %p71
        %p394 = pneg %p68
        %p395 = pneg %p92
        %p396 = pneg %p89
        %p397 = pneg %p113
        %p398 = pneg %p110
        %p399 = pneg %p134
        %p400 = pneg %p131
        %p401 = pneg %p155
        %p402 = pneg %p152
        %p403 = pneg %p176
        %p404 = pneg %p173
        %p405 = pneg %p197
        %p406 = pneg %p194
        %p407 = pneg %p218
        %p408 = pneg %p215
        %p409 = pneg %p239
        %p410 = pneg %p236
        %p411 = pneg %p260
        %p412 = pneg %p257
        %p413 = pneg %p286
        %p414 = pneg %p283
        %s415 = sand.u32 %s273, 1
        %s416 = sand.u32 %s273, 1
        %s417 = smul.addr %s416, 32
        %s418 = scalar_lea.vmem [#allocation3], %s417
        %s419 = smul.u32 4, %s24
        %s420 = ssub.s32 7, %s419
        %p421 = scmp.lt.s32.totalorder %s420, 4
        %s422 = scalar_select %p421, %s420, 4
        %s423 = smul.u32 128, %s422
        %p424 = scmp.lt.s32.totalorder %s419, 6
        %s425 = scalar_select %p424, %s419, 6
        %s426 = smul.addr %s425, 8
        %s427 = scalar_lea.vmem %s0, %s426
        %s428 = smul.u32 4, %s24
        %s429 = ssub.s32 7, %s428
        %p430 = scmp.lt.s32.totalorder %s429, 4
        %s431 = scalar_select %p430, %s429, 4
        %s432 = smul.u32 128, %s431
        %s433 = smul.u32 4, %s24
        %s434 = ssub.s32 7, %s433
        %p435 = scmp.lt.s32.totalorder %s434, 4
        %s436 = scalar_select %p435, %s434, 4
        %s437 = smul.u32 128, %s436
        %p438 = scmp.lt.s32.totalorder %s433, 6
        %s439 = scalar_select %p438, %s433, 6
        %s440 = smul.addr %s439, 8
        %s441 = scalar_lea.vmem %s1, %s440
        %s442 = smul.u32 4, %s24
        %s443 = ssub.s32 7, %s442
        %p444 = scmp.lt.s32.totalorder %s443, 4
        %s445 = scalar_select %p444, %s443, 4
        %s446 = smul.u32 128, %s445
        %s447 = smul.u32 4, %s24
        %s448 = ssub.s32 7, %s447
        %p449 = scmp.lt.s32.totalorder %s448, 4
        %s450 = scalar_select %p449, %s448, 4
        %s451 = smul.u32 128, %s450
        %v452 = vld [vmem:[%s427] sm:$0xff]
        %v453 = vld [vmem:[%s427 + $0x8] sm:$0xff]
        %v454 = vld [vmem:[%s427 + $0x10] sm:$0xff]
        %v455 = vld [vmem:[%s427 + $0x18] sm:$0xff]
        %v456 = vld [vmem:[%s2] sm:$0xff]
        %v457 = vld [vmem:[%s2 + $0x8] sm:$0xf]
        %v458 = vld [vmem:[%s441] sm:$0xff]
        %v459 = vld [vmem:[%s441 + $0x8] sm:$0xff]
        %v460 = vld [vmem:[%s441 + $0x10] sm:$0xff]
        %v461 = vld [vmem:[%s441 + $0x18] sm:$0xff]
        %v462 = vld [vmem:[%s3] sm:$0xf]
        %vm463 = vcmask 31744
        %v465 = vsel %vm463, %v458, 0
        %v468 = vsel %vm463, %v459, 0
        %v471 = vsel %vm463, %v460, 0
        %v474 = vsel %vm463, %v461, 0
        %vm476 = vcmask 1043456
        %v478 = vsel %vm476, %v462, 0
        %480 = vmatprep.subr.mxu0 0.0
        %481 = vmatpush1.msra.mxu0 %v478
        %482 = vmatprep.subr.mxu0 0.0
        %483 = vmatpush1.msra.mxu0 0.0
        %484 = vmatprep.subr.mxu0 0.0
        %485 = vmatpush1.msra.mxu0 0.0
        %486 = vmatprep.subr.mxu0 0.0
        %487 = vmatpush1.msra.mxu0 0.0
        %488 = vmatprep.subr.mxu0 0.0
        %489 = vmatpush1.msra.mxu0 0.0
        %490 = vmatprep.subr.mxu0 0.0
        %491 = vmatpush1.msra.mxu0 0.0
        %492 = vmatprep.subr.mxu0 0.0
        %493 = vmatpush1.msra.mxu0 0.0
        %494 = vmatprep.subr.mxu0 0.0
        %495 = vmatpush1.msra.mxu0 0.0
        %496 = vmatprep.subr.mxu0 0.0
        %497 = vmatpush1.msra.mxu0 0.0
        %498 = vmatprep.subr.mxu0 0.0
        %499 = vmatpush1.msra.mxu0 0.0
        %500 = vmatprep.subr.mxu0 0.0
        %501 = vmatpush1.msra.mxu0 0.0
        %502 = vmatprep.subr.mxu0 0.0
        %503 = vmatpush1.msra.mxu0 0.0
        %504 = vmatprep.subr.mxu0 0.0
        %505 = vmatpush1.msra.mxu0 0.0
        %506 = vmatprep.subr.mxu0 0.0
        %507 = vmatpush1.msra.mxu0 0.0
        %508 = vmatprep.subr.mxu0 0.0
        %509 = vmatpush1.msra.mxu0 0.0
        %510 = vmatprep.subr.mxu0 0.0
        %511 = vmatpush1.msra.mxu0 0.0
        %512 = vmatprep.subr.mxu0 0.0
        %513 = vmatpush1.msra.mxu0 0.0
        %514 = vmatprep.subr.mxu0 0.0
        %515 = vmatpush1.msra.mxu0 0.0
        %516 = vmatprep.subr.mxu0 0.0
        %517 = vmatpush1.msra.mxu0 0.0
        %518 = vmatprep.subr.mxu0 0.0
        %519 = vmatpush1.msra.mxu0 0.0
        %520 = vmatprep.subr.mxu0 0.0
        %521 = vmatpush1.msra.mxu0 0.0
        %522 = vmatprep.subr.mxu0 0.0
        %523 = vmatpush1.msra.mxu0 0.0
        %524 = vmatprep.subr.mxu0 0.0
        %525 = vmatpush1.msra.mxu0 0.0
        %526 = vmatprep.subr.mxu0 0.0
        %527 = vmatpush1.msra.mxu0 0.0
        %528 = vmatprep.subr.mxu0 0.0
        %529 = vmatpush1.msra.mxu0 0.0
        %530 = vmatprep.subr.mxu0 0.0
        %531 = vmatpush1.msra.mxu0 0.0
        %532 = vmatprep.subr.mxu0 0.0
        %533 = vmatpush1.msra.mxu0 0.0
        %534 = vmatprep.subr.mxu0 0.0
        %535 = vmatpush1.msra.mxu0 0.0
        %536 = vmatprep.subr.mxu0 0.0
        %537 = vmatpush1.msra.mxu0 0.0
        %538 = vmatprep.subr.mxu0 0.0
        %539 = vmatpush1.msra.mxu0 0.0
        %540 = vmatprep.subr.mxu0 0.0
        %541 = vmatpush1.msra.mxu0 0.0
        %542 = vmatprep.subr.mxu0 0.0
        %543 = vmatpush1.msra.mxu0 0.0
        %544 = vmatprep.mubr.f32.mxu0 0.0
        %545 = vmatmul.mubr.f32.gmra.mrb[0].mxu0 %v465
        %v546 = vpop.f32.mrb[0].mxu0
        %v547 = vadd.f32 0.0, %v546
        %v548 = vpop.f32.mrb[0].mxu0
        %549 = vmatprep.mubr.f32.mxu0 0.0
        %550 = vmatmul.mubr.f32.gmra.mrb[0].mxu0 %v468
        %v551 = vpop.f32.mrb[0].mxu0
        %v552 = vadd.f32 0.0, %v551
        %v553 = vpop.f32.mrb[0].mxu0
        %554 = vmatprep.mubr.f32.mxu0 0.0
        %555 = vmatmul.mubr.f32.gmra.mrb[0].mxu0 %v471
        %v556 = vpop.f32.mrb[0].mxu0
        %v557 = vadd.f32 0.0, %v556
        %v558 = vpop.f32.mrb[0].mxu0
        %559 = vmatprep.mubr.f32.mxu0 0.0
        %560 = vmatmul.mubr.f32.gmra.mrb[0].mxu0 %v474
        %v561 = vpop.f32.mrb[0].mxu0
        %v562 = vadd.f32 0.0, %v561
        %v563 = vpop.f32.mrb[0].mxu0
        %564 = vdwg.mxu0
        %vm565 = vcmask 97280
        %v567 = vsel %vm565, %v452, 0
        %v570 = vsel %vm565, %v453, 0
        %v573 = vsel %vm565, %v454, 0
        %v576 = vsel %vm565, %v455, 0
        %v579 = vsel %vm476, %v457, 0
        %581 = vmatprep.subr.mxu0 0.0
        %582 = vmatpush1.msra.mxu0 %v456
        %583 = vmatprep.subr.mxu0 0.0
        %584 = vmatpush1.msra.mxu0 %v579
        %585 = vmatprep.subr.mxu0 0.0
        %586 = vmatpush1.msra.mxu0 0.0
        %587 = vmatprep.subr.mxu0 0.0
        %588 = vmatpush1.msra.mxu0 0.0
        %589 = vmatprep.subr.mxu0 0.0
        %590 = vmatpush1.msra.mxu0 0.0
        %591 = vmatprep.subr.mxu0 0.0
        %592 = vmatpush1.msra.mxu0 0.0
        %593 = vmatprep.subr.mxu0 0.0
        %594 = vmatpush1.msra.mxu0 0.0
        %595 = vmatprep.subr.mxu0 0.0
        %596 = vmatpush1.msra.mxu0 0.0
        %597 = vmatprep.subr.mxu0 0.0
        %598 = vmatpush1.msra.mxu0 0.0
        %599 = vmatprep.subr.mxu0 0.0
        %600 = vmatpush1.msra.mxu0 0.0
        %601 = vmatprep.subr.mxu0 0.0
        %602 = vmatpush1.msra.mxu0 0.0
        %603 = vmatprep.subr.mxu0 0.0
        %604 = vmatpush1.msra.mxu0 0.0
        %605 = vmatprep.subr.mxu0 0.0
        %606 = vmatpush1.msra.mxu0 0.0
        %607 = vmatprep.subr.mxu0 0.0
        %608 = vmatpush1.msra.mxu0 0.0
        %609 = vmatprep.subr.mxu0 0.0
        %610 = vmatpush1.msra.mxu0 0.0
        %611 = vmatprep.subr.mxu0 0.0
        %612 = vmatpush1.msra.mxu0 0.0
        %613 = vmatprep.subr.mxu0 0.0
        %614 = vmatpush1.msra.mxu0 0.0
        %615 = vmatprep.subr.mxu0 0.0
        %616 = vmatpush1.msra.mxu0 0.0
        %617 = vmatprep.subr.mxu0 0.0
        %618 = vmatpush1.msra.mxu0 0.0
        %619 = vmatprep.subr.mxu0 0.0
        %620 = vmatpush1.msra.mxu0 0.0
        %621 = vmatprep.subr.mxu0 0.0
        %622 = vmatpush1.msra.mxu0 0.0
        %623 = vmatprep.subr.mxu0 0.0
        %624 = vmatpush1.msra.mxu0 0.0
        %625 = vmatprep.subr.mxu0 0.0
        %626 = vmatpush1.msra.mxu0 0.0
        %627 = vmatprep.subr.mxu0 0.0
        %628 = vmatpush1.msra.mxu0 0.0
        %629 = vmatprep.subr.mxu0 0.0
        %630 = vmatpush1.msra.mxu0 0.0
        %631 = vmatprep.subr.mxu0 0.0
        %632 = vmatpush1.msra.mxu0 0.0
        %633 = vmatprep.subr.mxu0 0.0
        %634 = vmatpush1.msra.mxu0 0.0
        %635 = vmatprep.subr.mxu0 0.0
        %636 = vmatpush1.msra.mxu0 0.0
        %637 = vmatprep.subr.mxu0 0.0
        %638 = vmatpush1.msra.mxu0 0.0
        %639 = vmatprep.subr.mxu0 0.0
        %640 = vmatpush1.msra.mxu0 0.0
        %641 = vmatprep.subr.mxu0 0.0
        %642 = vmatpush1.msra.mxu0 0.0
        %643 = vmatprep.subr.mxu0 0.0
        %644 = vmatpush1.msra.mxu0 0.0
        %645 = vmatprep.mubr.f32.mxu0 0.0
        %646 = vmatmul.mubr.f32.gmra.mrb[0].mxu0 %v567
        %v647 = vpop.f32.mrb[0].mxu0
        %v648 = vadd.f32 %v547, %v647
        %v649 = vpop.f32.mrb[0].mxu0
        %650 = vmatprep.mubr.f32.mxu0 0.0
        %651 = vmatmul.mubr.f32.gmra.mrb[0].mxu0 %v570
        %v652 = vpop.f32.mrb[0].mxu0
        %v653 = vadd.f32 %v552, %v652
        %v654 = vpop.f32.mrb[0].mxu0
        %655 = vmatprep.mubr.f32.mxu0 0.0
        %656 = vmatmul.mubr.f32.gmra.mrb[0].mxu0 %v573
        %v657 = vpop.f32.mrb[0].mxu0
        %v658 = vadd.f32 %v557, %v657
        %v659 = vpop.f32.mrb[0].mxu0
        %660 = vmatprep.mubr.f32.mxu0 0.0
        %661 = vmatmul.mubr.f32.gmra.mrb[0].mxu0 %v576
        %v662 = vpop.f32.mrb[0].mxu0
        %v663 = vadd.f32 %v562, %v662
        %v664 = vpop.f32.mrb[0].mxu0
        %665 = vdwg.mxu0
        %v666 = vld [vmem:[%s4] sm:$0x1]
        %v668 = vlaneseq
        %v669 = vshrl.u32 %v668, 7
        %v670 = vsub.s32 0, %v669
        %v671 = vrot.slane %v666, %v670
        %v673 = vadd.f32 %v648, %v671
        %v674 = vadd.f32 %v653, %v671
        %v675 = vadd.f32 %v658, %v671
        %v676 = vadd.f32 %v663, %v671
        %v677 = vmax.f32 %v673, 0.0
        %v678 = vmax.f32 %v674, 0.0
        %v679 = vmax.f32 %v675, 0.0
        %v680 = vmax.f32 %v676, 0.0
        %v681 = vld [vmem:[%s5] sm:$0xff]
        %v682 = vld [vmem:[%s5 + $0x8] sm:$0xff]
        %v683 = vld [vmem:[%s5 + $0x10] sm:$0xff]
        %v684 = vld [vmem:[%s5 + $0x18] sm:$0xff]
        %v685 = vld [vmem:[%s6] sm:$0x1]
        %v687 = vlaneseq
        %v688 = vshrl.u32 %v687, 7
        %v689 = vsub.s32 0, %v688
        %v690 = vrot.slane %v685, %v689
        %vm692 = vcmask 261120
        %v694 = vsel %vm692, %v677, 0
        %v697 = vsel %vm692, %v678, 0
        %v700 = vsel %vm692, %v679, 0
        %v703 = vsel %vm692, %v680, 0
        %705 = vmatprep.subr.mxu0 0.0
        %706 = vmatpush1.msra.mxu0 %v681
        %707 = vmatprep.subr.mxu0 0.0
        %708 = vmatpush1.msra.mxu0 %v682
        %709 = vmatprep.subr.mxu0 0.0
        %710 = vmatpush1.msra.mxu0 %v683
        %711 = vmatprep.subr.mxu0 0.0
        %712 = vmatpush1.msra.mxu0 %v684
        %713 = vmatprep.subr.mxu0 0.0
        %714 = vmatpush1.msra.mxu0 0.0
        %715 = vmatprep.subr.mxu0 0.0
        %716 = vmatpush1.msra.mxu0 0.0
        %717 = vmatprep.subr.mxu0 0.0
        %718 = vmatpush1.msra.mxu0 0.0
        %719 = vmatprep.subr.mxu0 0.0
        %720 = vmatpush1.msra.mxu0 0.0
        %721 = vmatprep.subr.mxu0 0.0
        %722 = vmatpush1.msra.mxu0 0.0
        %723 = vmatprep.subr.mxu0 0.0
        %724 = vmatpush1.msra.mxu0 0.0
        %725 = vmatprep.subr.mxu0 0.0
        %726 = vmatpush1.msra.mxu0 0.0
        %727 = vmatprep.subr.mxu0 0.0
        %728 = vmatpush1.msra.mxu0 0.0
        %729 = vmatprep.subr.mxu0 0.0
        %730 = vmatpush1.msra.mxu0 0.0
        %731 = vmatprep.subr.mxu0 0.0
        %732 = vmatpush1.msra.mxu0 0.0
        %733 = vmatprep.subr.mxu0 0.0
        %734 = vmatpush1.msra.mxu0 0.0
        %735 = vmatprep.subr.mxu0 0.0
        %736 = vmatpush1.msra.mxu0 0.0
        %737 = vmatprep.subr.mxu0 0.0
        %738 = vmatpush1.msra.mxu0 0.0
        %739 = vmatprep.subr.mxu0 0.0
        %740 = vmatpush1.msra.mxu0 0.0
        %741 = vmatprep.subr.mxu0 0.0
        %742 = vmatpush1.msra.mxu0 0.0
        %743 = vmatprep.subr.mxu0 0.0
        %744 = vmatpush1.msra.mxu0 0.0
        %745 = vmatprep.subr.mxu0 0.0
        %746 = vmatpush1.msra.mxu0 0.0
        %747 = vmatprep.subr.mxu0 0.0
        %748 = vmatpush1.msra.mxu0 0.0
        %749 = vmatprep.subr.mxu0 0.0
        %750 = vmatpush1.msra.mxu0 0.0
        %751 = vmatprep.subr.mxu0 0.0
        %752 = vmatpush1.msra.mxu0 0.0
        %753 = vmatprep.subr.mxu0 0.0
        %754 = vmatpush1.msra.mxu0 0.0
        %755 = vmatprep.subr.mxu0 0.0
        %756 = vmatpush1.msra.mxu0 0.0
        %757 = vmatprep.subr.mxu0 0.0
        %758 = vmatpush1.msra.mxu0 0.0
        %759 = vmatprep.subr.mxu0 0.0
        %760 = vmatpush1.msra.mxu0 0.0
        %761 = vmatprep.subr.mxu0 0.0
        %762 = vmatpush1.msra.mxu0 0.0
        %763 = vmatprep.subr.mxu0 0.0
        %764 = vmatpush1.msra.mxu0 0.0
        %765 = vmatprep.subr.mxu0 0.0
        %766 = vmatpush1.msra.mxu0 0.0
        %767 = vmatprep.subr.mxu0 0.0
        %768 = vmatpush1.msra.mxu0 0.0
        %769 = vmatprep.mubr.f32.mxu0 0.0
        %770 = vmatmul.mubr.f32.gmra.mrb[0].mxu0 %v694
        %v771 = vpop.f32.mrb[0].mxu0
        %v772 = vadd.f32 %v690, %v771
        %v773 = vpop.f32.mrb[0].mxu0
        %774 = vmatprep.mubr.f32.mxu0 0.0
        %775 = vmatmul.mubr.f32.gmra.mrb[0].mxu0 %v697
        %v776 = vpop.f32.mrb[0].mxu0
        %v777 = vadd.f32 %v690, %v776
        %v778 = vpop.f32.mrb[0].mxu0
        %779 = vmatprep.mubr.f32.mxu0 0.0
        %780 = vmatmul.mubr.f32.gmra.mrb[0].mxu0 %v700
        %v781 = vpop.f32.mrb[0].mxu0
        %v782 = vadd.f32 %v690, %v781
        %v783 = vpop.f32.mrb[0].mxu0
        %784 = vmatprep.mubr.f32.mxu0 0.0
        %785 = vmatmul.mubr.f32.gmra.mrb[0].mxu0 %v703
        %v786 = vpop.f32.mrb[0].mxu0
        %v787 = vadd.f32 %v690, %v786
        %v788 = vpop.f32.mrb[0].mxu0
        %789 = vdwg.mxu0
        %v790 = vmax.f32 %v772, 0.0
        %v791 = vmax.f32 %v777, 0.0
        %v792 = vmax.f32 %v782, 0.0
        %v793 = vmax.f32 %v787, 0.0
        %v794 = vld [vmem:[%s7] sm:$0xff]
        %v795 = vld [vmem:[%s7 + $0x8] sm:$0xff]
        %v796 = vld [vmem:[%s7 + $0x10] sm:$0xff]
        %v797 = vld [vmem:[%s7 + $0x18] sm:$0xff]
        %v798 = vld [vmem:[%s8] sm:$0x1]
        %v800 = vlaneseq
        %v801 = vshrl.u32 %v800, 7
        %v802 = vsub.s32 0, %v801
        %v803 = vrot.slane %v798, %v802
        %v806 = vsel %vm692, %v790, 0
        %v809 = vsel %vm692, %v791, 0
        %v812 = vsel %vm692, %v792, 0
        %v815 = vsel %vm692, %v793, 0
        %817 = vmatprep.subr.mxu0 0.0
        %818 = vmatpush1.msra.mxu0 %v794
        %819 = vmatprep.subr.mxu0 0.0
        %820 = vmatpush1.msra.mxu0 %v795
        %821 = vmatprep.subr.mxu0 0.0
        %822 = vmatpush1.msra.mxu0 %v796
        %823 = vmatprep.subr.mxu0 0.0
        %824 = vmatpush1.msra.mxu0 %v797
        %825 = vmatprep.subr.mxu0 0.0
        %826 = vmatpush1.msra.mxu0 0.0
        %827 = vmatprep.subr.mxu0 0.0
        %828 = vmatpush1.msra.mxu0 0.0
        %829 = vmatprep.subr.mxu0 0.0
        %830 = vmatpush1.msra.mxu0 0.0
        %831 = vmatprep.subr.mxu0 0.0
        %832 = vmatpush1.msra.mxu0 0.0
        %833 = vmatprep.subr.mxu0 0.0
        %834 = vmatpush1.msra.mxu0 0.0
        %835 = vmatprep.subr.mxu0 0.0
        %836 = vmatpush1.msra.mxu0 0.0
        %837 = vmatprep.subr.mxu0 0.0
        %838 = vmatpush1.msra.mxu0 0.0
        %839 = vmatprep.subr.mxu0 0.0
        %840 = vmatpush1.msra.mxu0 0.0
        %841 = vmatprep.subr.mxu0 0.0
        %842 = vmatpush1.msra.mxu0 0.0
        %843 = vmatprep.subr.mxu0 0.0
        %844 = vmatpush1.msra.mxu0 0.0
        %845 = vmatprep.subr.mxu0 0.0
        %846 = vmatpush1.msra.mxu0 0.0
        %847 = vmatprep.subr.mxu0 0.0
        %848 = vmatpush1.msra.mxu0 0.0
        %849 = vmatprep.subr.mxu0 0.0
        %850 = vmatpush1.msra.mxu0 0.0
        %851 = vmatprep.subr.mxu0 0.0
        %852 = vmatpush1.msra.mxu0 0.0
        %853 = vmatprep.subr.mxu0 0.0
        %854 = vmatpush1.msra.mxu0 0.0
        %855 = vmatprep.subr.mxu0 0.0
        %856 = vmatpush1.msra.mxu0 0.0
        %857 = vmatprep.subr.mxu0 0.0
        %858 = vmatpush1.msra.mxu0 0.0
        %859 = vmatprep.subr.mxu0 0.0
        %860 = vmatpush1.msra.mxu0 0.0
        %861 = vmatprep.subr.mxu0 0.0
        %862 = vmatpush1.msra.mxu0 0.0
        %863 = vmatprep.subr.mxu0 0.0
        %864 = vmatpush1.msra.mxu0 0.0
        %865 = vmatprep.subr.mxu0 0.0
        %866 = vmatpush1.msra.mxu0 0.0
        %867 = vmatprep.subr.mxu0 0.0
        %868 = vmatpush1.msra.mxu0 0.0
        %869 = vmatprep.subr.mxu0 0.0
        %870 = vmatpush1.msra.mxu0 0.0
        %871 = vmatprep.subr.mxu0 0.0
        %872 = vmatpush1.msra.mxu0 0.0
        %873 = vmatprep.subr.mxu0 0.0
        %874 = vmatpush1.msra.mxu0 0.0
        %875 = vmatprep.subr.mxu0 0.0
        %876 = vmatpush1.msra.mxu0 0.0
        %877 = vmatprep.subr.mxu0 0.0
        %878 = vmatpush1.msra.mxu0 0.0
        %879 = vmatprep.subr.mxu0 0.0
        %880 = vmatpush1.msra.mxu0 0.0
        %881 = vmatprep.mubr.f32.mxu0 0.0
        %882 = vmatmul.mubr.f32.gmra.mrb[0].mxu0 %v806
        %v883 = vpop.f32.mrb[0].mxu0
        %v884 = vadd.f32 %v803, %v883
        %v885 = vpop.f32.mrb[0].mxu0
        %886 = vmatprep.mubr.f32.mxu0 0.0
        %887 = vmatmul.mubr.f32.gmra.mrb[0].mxu0 %v809
        %v888 = vpop.f32.mrb[0].mxu0
        %v889 = vadd.f32 %v803, %v888
        %v890 = vpop.f32.mrb[0].mxu0
        %891 = vmatprep.mubr.f32.mxu0 0.0
        %892 = vmatmul.mubr.f32.gmra.mrb[0].mxu0 %v812
        %v893 = vpop.f32.mrb[0].mxu0
        %v894 = vadd.f32 %v803, %v893
        %v895 = vpop.f32.mrb[0].mxu0
        %896 = vmatprep.mubr.f32.mxu0 0.0
        %897 = vmatmul.mubr.f32.gmra.mrb[0].mxu0 %v815
        %v898 = vpop.f32.mrb[0].mxu0
        %v899 = vadd.f32 %v803, %v898
        %v900 = vpop.f32.mrb[0].mxu0
        %901 = vdwg.mxu0
        %v902 = vmax.f32 %v884, 0.0
        %v903 = vmax.f32 %v889, 0.0
        %v904 = vmax.f32 %v894, 0.0
        %v905 = vmax.f32 %v899, 0.0
        %v906 = vld [vmem:[%s9] sm:$0xff]
        %v907 = vld [vmem:[%s9 + $0x8] sm:$0xff]
        %v908 = vld [vmem:[%s9 + $0x10] sm:$0xff]
        %v909 = vld [vmem:[%s9 + $0x18] sm:$0xff]
        %v910 = vld [vmem:[#allocation2] sm:$0x1]
        %v912 = vlaneseq
        %v913 = vshrl.u32 %v912, 7
        %v914 = vsub.s32 0, %v913
        %v915 = vrot.slane %v910, %v914
        %v918 = vsel %vm692, %v902, 0
        %v921 = vsel %vm692, %v903, 0
        %v924 = vsel %vm692, %v904, 0
        %v927 = vsel %vm692, %v905, 0
        %929 = vmatprep.subr.mxu0 0.0
        %930 = vmatpush1.msra.mxu0 %v906
        %931 = vmatprep.subr.mxu0 0.0
        %932 = vmatpush1.msra.mxu0 %v907
        %933 = vmatprep.subr.mxu0 0.0
        %934 = vmatpush1.msra.mxu0 %v908
        %935 = vmatprep.subr.mxu0 0.0
        %936 = vmatpush1.msra.mxu0 %v909
        %937 = vmatprep.subr.mxu0 0.0
        %938 = vmatpush1.msra.mxu0 0.0
        %939 = vmatprep.subr.mxu0 0.0
        %940 = vmatpush1.msra.mxu0 0.0
        %941 = vmatprep.subr.mxu0 0.0
        %942 = vmatpush1.msra.mxu0 0.0
        %943 = vmatprep.subr.mxu0 0.0
        %944 = vmatpush1.msra.mxu0 0.0
        %945 = vmatprep.subr.mxu0 0.0
        %946 = vmatpush1.msra.mxu0 0.0
        %947 = vmatprep.subr.mxu0 0.0
        %948 = vmatpush1.msra.mxu0 0.0
        %949 = vmatprep.subr.mxu0 0.0
        %950 = vmatpush1.msra.mxu0 0.0
        %951 = vmatprep.subr.mxu0 0.0
        %952 = vmatpush1.msra.mxu0 0.0
        %953 = vmatprep.subr.mxu0 0.0
        %954 = vmatpush1.msra.mxu0 0.0
        %955 = vmatprep.subr.mxu0 0.0
        %956 = vmatpush1.msra.mxu0 0.0
        %957 = vmatprep.subr.mxu0 0.0
        %958 = vmatpush1.msra.mxu0 0.0
        %959 = vmatprep.subr.mxu0 0.0
        %960 = vmatpush1.msra.mxu0 0.0
        %961 = vmatprep.subr.mxu0 0.0
        %962 = vmatpush1.msra.mxu0 0.0
        %963 = vmatprep.subr.mxu0 0.0
        %964 = vmatpush1.msra.mxu0 0.0
        %965 = vmatprep.subr.mxu0 0.0
        %966 = vmatpush1.msra.mxu0 0.0
        %967 = vmatprep.subr.mxu0 0.0
        %968 = vmatpush1.msra.mxu0 0.0
        %969 = vmatprep.subr.mxu0 0.0
        %970 = vmatpush1.msra.mxu0 0.0
        %971 = vmatprep.subr.mxu0 0.0
        %972 = vmatpush1.msra.mxu0 0.0
        %973 = vmatprep.subr.mxu0 0.0
        %974 = vmatpush1.msra.mxu0 0.0
        %975 = vmatprep.subr.mxu0 0.0
        %976 = vmatpush1.msra.mxu0 0.0
        %977 = vmatprep.subr.mxu0 0.0
        %978 = vmatpush1.msra.mxu0 0.0
        %979 = vmatprep.subr.mxu0 0.0
        %980 = vmatpush1.msra.mxu0 0.0
        %981 = vmatprep.subr.mxu0 0.0
        %982 = vmatpush1.msra.mxu0 0.0
        %983 = vmatprep.subr.mxu0 0.0
        %984 = vmatpush1.msra.mxu0 0.0
        %985 = vmatprep.subr.mxu0 0.0
        %986 = vmatpush1.msra.mxu0 0.0
        %987 = vmatprep.subr.mxu0 0.0
        %988 = vmatpush1.msra.mxu0 0.0
        %989 = vmatprep.subr.mxu0 0.0
        %990 = vmatpush1.msra.mxu0 0.0
        %991 = vmatprep.subr.mxu0 0.0
        %992 = vmatpush1.msra.mxu0 0.0
        %993 = vmatprep.mubr.f32.mxu0 0.0
        %994 = vmatmul.mubr.f32.gmra.mrb[0].mxu0 %v918
        %v995 = vpop.f32.mrb[0].mxu0
        %v996 = vadd.f32 %v915, %v995
        %v997 = vpop.f32.mrb[0].mxu0
        %998 = vmatprep.mubr.f32.mxu0 0.0
        %999 = vmatmul.mubr.f32.gmra.mrb[0].mxu0 %v921
        %v1000 = vpop.f32.mrb[0].mxu0
        %v1001 = vadd.f32 %v915, %v1000
        %v1002 = vpop.f32.mrb[0].mxu0
        %1003 = vmatprep.mubr.f32.mxu0 0.0
        %1004 = vmatmul.mubr.f32.gmra.mrb[0].mxu0 %v924
        %v1005 = vpop.f32.mrb[0].mxu0
        %v1006 = vadd.f32 %v915, %v1005
        %v1007 = vpop.f32.mrb[0].mxu0
        %1008 = vmatprep.mubr.f32.mxu0 0.0
        %1009 = vmatmul.mubr.f32.gmra.mrb[0].mxu0 %v927
        %v1010 = vpop.f32.mrb[0].mxu0
        %v1011 = vadd.f32 %v915, %v1010
        %v1012 = vpop.f32.mrb[0].mxu0
        %1013 = vdwg.mxu0
        %vm1014 = vcmask 7168
        %1015 = vst.msk [vmem:[%s418] sm:$0xff] %vm1014, %v996
        %1016 = vst.msk [vmem:[%s418 + $0x8] sm:$0xff] %vm1014, %v1001
        %1017 = vst.msk [vmem:[%s418 + $0x10] sm:$0xff] %vm1014, %v1006
        %1018 = vst.msk [vmem:[%s418 + $0x18] sm:$0xff] %vm1014, %v1011
        %s1019 = sand.u32 %s273, 1
        %s1020 = sand.u32 %s273, 1
        %s1021 = smul.addr %s1020, 32
        %s1022 = scalar_lea.vmem [#allocation3], %s1021
        // Predicated region
        $region65: #{tpu_custom_call.1} parent=63 // pred_check
          %p1023 = pneg %p283
        $region66: #{tpu_custom_call.1} parent=63 // pred_check_branch
          %1025 = sbr.rel (%p1023) target = $region68
        $region67: #{tpu_custom_call.1} parent=63 // pred_region
          %s1026 = smul.u32 4, %s24
          %s1027 = ssub.s32 7, %s1026
          %p1028 = scmp.lt.s32.totalorder %s1027, 4
          %s1029 = scalar_select %p1028, %s1027, 4
          %s1030 = smul.u32 128, %s1029
          %p1031 = scmp.ne.s32.totalorder 0, %s1030
          %s1032 = smul.addr %s1026, 8
          %s1033 = scalar_lea.vmem %s11, %s1032
          // Predicated region
          $region69: #{tpu_custom_call.1} parent=67 // pred_check
            %p1034 = pneg %p1031
          $region70: #{tpu_custom_call.1} parent=67 // pred_check_branch
            %1036 = sbr.rel (%p1034) target = $region72
          $region71: #{tpu_custom_call.1} parent=67 // pred_region
            // Predicated region
            $region73: #{tpu_custom_call.1} parent=71 // pred_check
              _
            $region74: #{tpu_custom_call.1} parent=71 // pred_check_branch
              %1038 = sbr.rel (0) target = $region76
            $region75: #{tpu_custom_call.1} parent=71 // pred_region
              // Predicated region
              $region95: #{tpu_custom_call.1} parent=75 // pred_check
                _
              $region96: #{tpu_custom_call.1} parent=75 // pred_check_branch
                %1093 = sbr.rel (0) target = $region98
              $region97: #{tpu_custom_call.1} parent=75 // pred_region
                %s1094 = sshrl.u32 %s1029, 2
                // While loop
                $region99: #{tpu_custom_call.1} parent=97 // loop_pre_header
                  _
                $region100: #{tpu_custom_call.1} parent=97 // loop_header
                  %s1096 = sphi 0, %s1098
                  %p1097 = scmp.ge.s32.totalorder %s1096, %s1094
                  %s1101 = sphi 0, %s1114
                  %s1102 = sphi %s1022, %s1117
                  %s1103 = sphi %s1033, %s1118
                $region101: #{tpu_custom_call.1} parent=97 // loop_header_branch
                  %1100 = sbr.rel (%p1097) target = $region105
                $region102: #{tpu_custom_call.1} parent=97 // loop_body
                  %v1104 = vld [vmem:[%s1102] sm:$0xff]
                  %1105 = vst [vmem:[%s1103] sm:$0xff] %v1104
                  %v1106 = vld [vmem:[%s1102 + $0x8] sm:$0xff]
                  %1107 = vst [vmem:[%s1103 + $0x8] sm:$0xff] %v1106
                  %v1108 = vld [vmem:[%s1102 + $0x10] sm:$0xff]
                  %1109 = vst [vmem:[%s1103 + $0x10] sm:$0xff] %v1108
                  %v1110 = vld [vmem:[%s1102 + $0x18] sm:$0xff]
                  %1111 = vst [vmem:[%s1103 + $0x18] sm:$0xff] %v1110
                  %s1112 = sadd.s32 1, %s1101
                  %p1113 = scmp.ge.s32.totalorder %s1112, %s1094
                  %s1114 = scalar_select %p1113, 0, %s1112
                  %s1115 = smul.u32 %s1114, 32
                  %s1116 = smul.u32 %s1114, 32
                  %s1117 = scalar_lea.vmem %s1022, %s1115 [#allocation3]
                  %s1118 = scalar_lea.vmem %s1033, %s1116
                $region103: #{tpu_custom_call.1} parent=97 // loop_footer
                  %s1098 = sadd.s32 %s1096, 1
                $region104: #{tpu_custom_call.1} parent=97 // loop_footer_branch
                  %1095 = sbr.rel target = $region100
                $region105: #{tpu_custom_call.1} parent=97 // loop_exit
                  _
                %s1119 = sshrl.u32 %s1029, 2
                %s1120 = sand.u32 %s1029, 3
                %s1121 = smul.u32 %s1119, 4
                %s1122 = smul.u32 8, %s1121
                %s1123 = scalar_lea.vmem %s1022, %s1122 [#allocation3]
                %s1124 = smul.u32 8, %s1121
                %s1125 = scalar_lea.vmem %s1033, %s1124
                // While loop
                $region106: #{tpu_custom_call.1} parent=97 // loop_pre_header
                  _
                $region107: #{tpu_custom_call.1} parent=97 // loop_header
                  %s1127 = sphi 0, %s1129
                  %p1128 = scmp.ge.s32.totalorder %s1127, %s1120
                  %s1132 = sphi 0, %s1139
                  %s1133 = sphi %s1123, %s1142
                  %s1134 = sphi %s1125, %s1143
                $region108: #{tpu_custom_call.1} parent=97 // loop_header_branch
                  %1131 = sbr.rel (%p1128) target = $region112
                $region109: #{tpu_custom_call.1} parent=97 // loop_body
                  %v1135 = vld [vmem:[%s1133] sm:$0xff]
                  %1136 = vst [vmem:[%s1134] sm:$0xff] %v1135
                  %s1137 = sadd.s32 1, %s1132
                  %p1138 = scmp.ge.s32.totalorder %s1137, %s1120
                  %s1139 = scalar_select %p1138, 0, %s1137
                  %s1140 = smul.u32 %s1139, 8
                  %s1141 = smul.u32 %s1139, 8
                  %s1142 = scalar_lea.vmem %s1123, %s1140 [#allocation3]
                  %s1143 = scalar_lea.vmem %s1125, %s1141
                $region110: #{tpu_custom_call.1} parent=97 // loop_footer
                  %s1129 = sadd.s32 %s1127, 1
                $region111: #{tpu_custom_call.1} parent=97 // loop_footer_branch
                  %1126 = sbr.rel target = $region107
                $region112: #{tpu_custom_call.1} parent=97 // loop_exit
                  _
              $region98: #{tpu_custom_call.1} parent=75 // pred_fallthru
                _
              // Predicated region
              $region113: #{tpu_custom_call.1} parent=75 // pred_check
                _
              $region114: #{tpu_custom_call.1} parent=75 // pred_check_branch
                %1145 = sbr.rel target = $region116
              $region115: #{tpu_custom_call.1} parent=75 // pred_region
                _
              $region116: #{tpu_custom_call.1} parent=75 // pred_fallthru
                _
            $region76: #{tpu_custom_call.1} parent=71 // pred_fallthru
              _
            // Predicated region
            $region77: #{tpu_custom_call.1} parent=71 // pred_check
              _
            $region78: #{tpu_custom_call.1} parent=71 // pred_check_branch
              %1040 = sbr.rel target = $region80
            $region79: #{tpu_custom_call.1} parent=71 // pred_region
              %s1042 = sshrl.u32 %s1029, 2
              // While loop
              $region81: #{tpu_custom_call.1} parent=79 // loop_pre_header
                _
              $region82: #{tpu_custom_call.1} parent=79 // loop_header
                %s1044 = sphi 0, %s1046
                %p1045 = scmp.ge.s32.totalorder %s1044, %s1042
                %s1049 = sphi 0, %s1062
                %s1050 = sphi %s1022, %s1065
                %s1051 = sphi %s1033, %s1066
              $region83: #{tpu_custom_call.1} parent=79 // loop_header_branch
                %1048 = sbr.rel (%p1045) target = $region87
              $region84: #{tpu_custom_call.1} parent=79 // loop_body
                %v1052 = vld [vmem:[%s1050] sm:$0xff]
                %1053 = vst [vmem:[%s1051] sm:$0xff] %v1052
                %v1054 = vld [vmem:[%s1050 + $0x8] sm:$0xff]
                %1055 = vst [vmem:[%s1051 + $0x8] sm:$0xff] %v1054
                %v1056 = vld [vmem:[%s1050 + $0x10] sm:$0xff]
                %1057 = vst [vmem:[%s1051 + $0x10] sm:$0xff] %v1056
                %v1058 = vld [vmem:[%s1050 + $0x18] sm:$0xff]
                %1059 = vst [vmem:[%s1051 + $0x18] sm:$0xff] %v1058
                %s1060 = sadd.s32 1, %s1049
                %p1061 = scmp.ge.s32.totalorder %s1060, %s1042
                %s1062 = scalar_select %p1061, 0, %s1060
                %s1063 = smul.u32 %s1062, 32
                %s1064 = smul.u32 %s1062, 32
                %s1065 = scalar_lea.vmem %s1022, %s1063 [#allocation3]
                %s1066 = scalar_lea.vmem %s1033, %s1064
              $region85: #{tpu_custom_call.1} parent=79 // loop_footer
                %s1046 = sadd.s32 %s1044, 1
              $region86: #{tpu_custom_call.1} parent=79 // loop_footer_branch
                %1043 = sbr.rel target = $region82
              $region87: #{tpu_custom_call.1} parent=79 // loop_exit
                _
              %s1067 = sshrl.u32 %s1029, 2
              %s1068 = sand.u32 %s1029, 3
              %s1069 = smul.u32 %s1067, 4
              %s1070 = smul.u32 8, %s1069
              %s1071 = scalar_lea.vmem %s1022, %s1070 [#allocation3]
              %s1072 = smul.u32 8, %s1069
              %s1073 = scalar_lea.vmem %s1033, %s1072
              // While loop
              $region88: #{tpu_custom_call.1} parent=79 // loop_pre_header
                _
              $region89: #{tpu_custom_call.1} parent=79 // loop_header
                %s1075 = sphi 0, %s1077
                %p1076 = scmp.ge.s32.totalorder %s1075, %s1068
                %s1080 = sphi 0, %s1087
                %s1081 = sphi %s1071, %s1090
                %s1082 = sphi %s1073, %s1091
              $region90: #{tpu_custom_call.1} parent=79 // loop_header_branch
                %1079 = sbr.rel (%p1076) target = $region94
              $region91: #{tpu_custom_call.1} parent=79 // loop_body
                %v1083 = vld [vmem:[%s1081] sm:$0xff]
                %1084 = vst [vmem:[%s1082] sm:$0xff] %v1083
                %s1085 = sadd.s32 1, %s1080
                %p1086 = scmp.ge.s32.totalorder %s1085, %s1068
                %s1087 = scalar_select %p1086, 0, %s1085
                %s1088 = smul.u32 %s1087, 8
                %s1089 = smul.u32 %s1087, 8
                %s1090 = scalar_lea.vmem %s1071, %s1088 [#allocation3]
                %s1091 = scalar_lea.vmem %s1073, %s1089
              $region92: #{tpu_custom_call.1} parent=79 // loop_footer
                %s1077 = sadd.s32 %s1075, 1
              $region93: #{tpu_custom_call.1} parent=79 // loop_footer_branch
                %1074 = sbr.rel target = $region89
              $region94: #{tpu_custom_call.1} parent=79 // loop_exit
                _
            $region80: #{tpu_custom_call.1} parent=71 // pred_fallthru
              _
          $region72: #{tpu_custom_call.1} parent=67 // pred_fallthru
            _
          %1146 = vnop
        $region68: #{tpu_custom_call.1} parent=63 // pred_fallthru
          _
      $region64: #{tpu_custom_call.1} parent=5 // pred_fallthru
        _
      %p1147 = scmp.le.s32.totalorder 2, %s19
      // Predicated region
      $region117: #{tpu_custom_call.1} parent=5 // pred_check
        %p1148 = pneg %p1147
      $region118: #{tpu_custom_call.1} parent=5 // pred_check_branch
        %1150 = sbr.rel (%p1148) target = $region120
      $region119: #{tpu_custom_call.1} parent=5 // pred_region
        %s1151 = ssub.s32 %s19, 2
        // Predicated region
        $region121: #{tpu_custom_call.1} parent=119 // pred_check
          %p1152 = pneg %p289
        $region122: #{tpu_custom_call.1} parent=119 // pred_check_branch
          %1154 = sbr.rel (%p1152) target = $region124
        $region123: #{tpu_custom_call.1} parent=119 // pred_region
          %s1155 = sand.u32 %s274, 1
          %s1156 = sand.u32 %s274, 1
          %s1157 = smul.addr %s1156, 32
          %s1158 = scalar_lea.vmem [#allocation3], %s1157
        $region124: #{tpu_custom_call.1} parent=119 // pred_fallthru
          _
      $region120: #{tpu_custom_call.1} parent=5 // pred_fallthru
        _
    $region6: #{tpu_custom_call.1} parent=1 // loop_footer
      %s23 = sadd.s32 1, %s19
    $region7: #{tpu_custom_call.1} parent=1 // loop_footer_branch
      %18 = sbr.rel target = $region3
    $region8: #{tpu_custom_call.1} parent=1 // loop_exit
      _

</llo_original>
